<compile_context>
chip_gen: v6e
topology: v6e:2x2x1
jax: 0.10.0
libtpu: 0.0.40
codegen_flags: <defaults>
</compile_context>

<pallas_src>
import jax
import jax.numpy as jnp
from jax.experimental import pallas as pl
from jax.experimental.pallas import tpu as pltpu

# TODO(synk): the original module reads ./data/prepositions.txt for out_dim;
# we hardcode a deterministic preposition list in-script instead.
PREPOSITIONS = [
    "in", "on", "at", "by", "with", "about", "against", "between",
    "into", "through", "during", "before", "after", "above", "below",
    "to", "from", "up", "down", "over", "under", "near", "of",
]

IN_DIM = 7
K_PAD = 8                      # 7 features + 1 "ones" column carrying the layer-1 bias
HIDDEN = 512
OUT_DIM = len(PREPOSITIONS)    # 23
OUT_PAD = 32                   # logits padded 23 -> 32 (f32, 4x less writeback than 128)
TILE_M_MAX = 2048              # max batch tile (per-step overhead amortized)
MIN_SPLIT_BATCH = 16           # below this, don't force a 2-step grid


def _round_up(n, m):
    return ((n + m - 1) // m) * m


def _pick_grid(batch):
    """Balanced batch tiling; >= 2 grid steps when possible (v7x: 2 TensorCores)."""
    nt = pl.cdiv(batch, TILE_M_MAX)
    if nt == 1 and batch >= MIN_SPLIT_BATCH:
        nt = 2
    tm = _round_up(pl.cdiv(batch, nt), 8)   # < 8 padded rows per tile
    return nt, tm


def _mlp_kernel(x_ref, w1_ref, w2_ref, b2_ref, w3_ref, b3_ref, o_ref):
    # Layer 1: Linear(7 -> 512) + ReLU.  x is (tm, 8) bf16 with a trailing ones
    # column; w1 row 7 holds the bias, so the bias add is free MXU work.
    h1 = jnp.dot(x_ref[...], w1_ref[...], preferred_element_type=jnp.float32)
    h1 = jnp.maximum(h1, 0.0)

    # Layer 2: Linear(512 -> 512) + ReLU (bias added in f32 on the VPU).
    h2 = jnp.dot(h1.astype(jnp.bfloat16), w2_ref[...],
                 preferred_element_type=jnp.float32)
    h2 = jnp.maximum(h2 + b2_ref[...], 0.0)

    # Layer 3: Linear(512 -> 32(pad)); logits, no activation.
    logits = jnp.dot(h2.astype(jnp.bfloat16), w3_ref[...],
                     preferred_element_type=jnp.float32)
    o_ref[...] = (logits + b3_ref[...]).astype(o_ref.dtype)


def mlp_forward(x, params):
    """x: (batch, ...) flattened to (batch, IN_DIM); returns (batch, OUT_DIM) f32 logits."""
    batch = x.shape[0]
    x2d = x.reshape(batch, -1).astype(jnp.float32)  # nn.Flatten equivalent
    assert x2d.shape[1] == IN_DIM

    nt, tm = _pick_grid(batch)
    batch_p = nt * tm

    # bf16 input tile: 7 features, a ones column (layer-1 bias), zero pad rows.
    x_pad = jnp.zeros((batch_p, K_PAD), jnp.bfloat16)
    x_pad = x_pad.at[:batch, :IN_DIM].set(x2d.astype(jnp.bfloat16))
    x_pad = x_pad.at[:batch, IN_DIM].set(jnp.bfloat16(1.0))

    w1, w2, b2, w3, b3 = params

    def wspec(shape):
        # Grid-invariant operand: VMEM-resident, single-buffered.
        return pl.BlockSpec(shape, lambda i: (0, 0), pipeline_mode=pl.Buffered(1))

    out = pl.pallas_call(
        _mlp_kernel,
        out_shape=jax.ShapeDtypeStruct((batch_p, OUT_PAD), jnp.float32),
        grid=(nt,),
        in_specs=[
            pl.BlockSpec((tm, K_PAD), lambda i: (i, 0)),  # x tile, double-buffered
            wspec((K_PAD, HIDDEN)),                       # w1 (bias folded in row 7)
            wspec((HIDDEN, HIDDEN)),                      # w2
            wspec((1, HIDDEN)),                           # b2
            wspec((HIDDEN, OUT_PAD)),                     # w3
            wspec((1, OUT_PAD)),                          # b3
        ],
        out_specs=pl.BlockSpec((tm, OUT_PAD), lambda i: (i, 0)),
        compiler_params=pltpu.CompilerParams(
            dimension_semantics=("parallel",),
            vmem_limit_bytes=32 * 1024 * 1024),
    )(x_pad, w1, w2, b2, w3, b3)

    # Padded slab is only 32 lanes wide, so this slice is a small HBM pass.
    return out[:batch, :OUT_DIM]


def init_params(key):
    """Deterministic init matching PyTorch Linear shapes.

    Weights stored transposed relative to torch (in_features, out_features),
    cast to bf16 and padded: w1 is (8, 512) with the layer-1 bias in row 7;
    w3/b3 are lane-padded 23 -> 32 with zero columns.  b2/b3 kept f32.
    """
    k1, k2, k3, k4, k5, k6 = jax.random.split(key, 6)

    def uniform(k, shape, fan_in):
        bound = 1.0 / jnp.sqrt(jnp.float32(fan_in))
        return jax.random.uniform(k, shape, jnp.float32, -bound, bound)

    w1_raw = uniform(k1, (IN_DIM, HIDDEN), IN_DIM)
    b1_raw = uniform(k2, (HIDDEN,), IN_DIM)
    w1 = jnp.zeros((K_PAD, HIDDEN), jnp.float32)
    w1 = w1.at[:IN_DIM, :].set(w1_raw)
    w1 = w1.at[IN_DIM, :].set(b1_raw)            # bias folded into the pad row
    w1 = w1.astype(jnp.bfloat16)

    w2 = uniform(k3, (HIDDEN, HIDDEN), HIDDEN).astype(jnp.bfloat16)
    b2 = uniform(k4, (1, HIDDEN), HIDDEN)

    w3_raw = uniform(k5, (HIDDEN, OUT_DIM), HIDDEN)
    w3 = jnp.zeros((HIDDEN, OUT_PAD), jnp.float32).at[:, :OUT_DIM].set(w3_raw)
    w3 = w3.astype(jnp.bfloat16)
    b3_raw = uniform(k6, (1, OUT_DIM), HIDDEN)
    b3 = jnp.zeros((1, OUT_PAD), jnp.float32).at[:, :OUT_DIM].set(b3_raw)

    return (w1, w2, b2, w3, b3)


def mlp_reference(x, params):
    """Pure-JAX reference using the exact same dtype pipeline as the kernel."""
    w1, w2, b2, w3, b3 = params
    x2d = x.reshape(x.shape[0], -1).astype(jnp.float32)
    ones = jnp.ones((x2d.shape[0], 1), jnp.float32)
    xp = jnp.concatenate([x2d, ones], axis=1).astype(jnp.bfloat16)
    h1 = jnp.maximum(
        jnp.dot(xp, w1, preferred_element_type=jnp.float32), 0.0)
    h2 = jnp.dot(h1.astype(jnp.bfloat16), w2, preferred_element_type=jnp.float32)
    h2 = jnp.maximum(h2 + b2, 0.0)
    logits = jnp.dot(h2.astype(jnp.bfloat16), w3, preferred_element_type=jnp.float32)
    return (logits + b3)[:, :OUT_DIM]


def _check(batch, kx, params):
    x = jax.random.normal(kx, (batch, IN_DIM), dtype=jnp.float32)
    out = jax.block_until_ready(mlp_forward(x, params))
    ref = mlp_reference(x, params)
    assert out.shape == (batch, OUT_DIM), out.shape
    assert jnp.allclose(out, ref, atol=2e-3, rtol=2e-3), \
        float(jnp.max(jnp.abs(out - ref)))


if __name__ == "__main__":
    key = jax.random.PRNGKey(0)
    kx1, kx2, kx3, kp = jax.random.split(key, 4)
    params = init_params(kp)

    _check(8, kx1, params)      # tiny batch: single grid step
    _check(300, kx2, params)    # ragged batch: 2 balanced tiles of 152
    _check(2600, kx3, params)   # large batch: 2 tiles of 1304 (big-tile path)

    print("KERNEL_OK")
</pallas_src>

<mosaic_0001>
module attributes {stable_mosaic.version = 11 : i64} {
  func.func @_mlp_kernel(%arg0: i32, %arg1: memref<8x8xbf16, #tpu.memory_space<vmem>>, %arg2: memref<8x512xbf16, #tpu.memory_space<vmem>>, %arg3: memref<512x512xbf16, #tpu.memory_space<vmem>>, %arg4: memref<1x512xf32, #tpu.memory_space<vmem>>, %arg5: memref<512x32xbf16, #tpu.memory_space<vmem>>, %arg6: memref<1x32xf32, #tpu.memory_space<vmem>>, %arg7: memref<8x32xf32, #tpu.memory_space<vmem>>) attributes {dimension_semantics = [#tpu.dimension_semantics<parallel>], iteration_bounds = array<i64: 1>, scalar_prefetch = 0 : i64, scratch_operands = 0 : i64, tpu.core_type = #tpu.core_type<tc>, window_params = [{transform_indices = @transform_0, window_bounds = array<i64: 8, 8>}, {pipeline_mode = #tpu.pipeline_mode<synchronous>, transform_indices = @transform_1, window_bounds = array<i64: 8, 512>}, {pipeline_mode = #tpu.pipeline_mode<synchronous>, transform_indices = @transform_2, window_bounds = array<i64: 512, 512>}, {pipeline_mode = #tpu.pipeline_mode<synchronous>, transform_indices = @transform_3, window_bounds = array<i64: 1, 512>}, {pipeline_mode = #tpu.pipeline_mode<synchronous>, transform_indices = @transform_4, window_bounds = array<i64: 512, 32>}, {pipeline_mode = #tpu.pipeline_mode<synchronous>, transform_indices = @transform_5, window_bounds = array<i64: 1, 32>}, {transform_indices = @transform_6, window_bounds = array<i64: 8, 32>}]} {
    %c0 = arith.constant 0 : index
    %c0_0 = arith.constant 0 : index
    %0 = vector.load %arg1[%c0, %c0_0] : memref<8x8xbf16, #tpu.memory_space<vmem>>, vector<8x8xbf16>
    %c0_1 = arith.constant 0 : index
    %c0_2 = arith.constant 0 : index
    %1 = vector.load %arg2[%c0_1, %c0_2] : memref<8x512xbf16, #tpu.memory_space<vmem>>, vector<8x512xbf16>
    %cst = arith.constant dense<0.000000e+00> : vector<8x512xf32>
    %2 = tpu.matmul %0, %1, %cst {dimension_numbers = #tpu.dot_dimension_numbers<[1], [0], [0], [1], [0, 0, 1, 1], [], []>} : vector<8x8xbf16>, vector<8x512xbf16>, vector<8x512xf32> -> vector<8x512xf32>
    %cst_3 = arith.constant 0.000000e+00 : f32
    %3 = vector.broadcast %cst_3 : f32 to vector<8x512xf32>
    %4 = arith.maximumf %2, %3 : vector<8x512xf32>
    %5 = arith.truncf %4 : vector<8x512xf32> to vector<8x512xbf16>
    %c0_4 = arith.constant 0 : index
    %c0_5 = arith.constant 0 : index
    %6 = vector.load %arg3[%c0_4, %c0_5] : memref<512x512xbf16, #tpu.memory_space<vmem>>, vector<512x512xbf16>
    %cst_6 = arith.constant dense<0.000000e+00> : vector<8x512xf32>
    %7 = tpu.matmul %5, %6, %cst_6 {dimension_numbers = #tpu.dot_dimension_numbers<[1], [0], [0], [1], [0, 0, 1, 1], [], []>} : vector<8x512xbf16>, vector<512x512xbf16>, vector<8x512xf32> -> vector<8x512xf32>
    %c0_7 = arith.constant 0 : index
    %c0_8 = arith.constant 0 : index
    %8 = vector.load %arg4[%c0_7, %c0_8] : memref<1x512xf32, #tpu.memory_space<vmem>>, vector<1x512xf32>
    %9 = vector.broadcast %8 : vector<1x512xf32> to vector<8x512xf32>
    %10 = arith.addf %7, %9 : vector<8x512xf32>
    %cst_9 = arith.constant 0.000000e+00 : f32
    %11 = vector.broadcast %cst_9 : f32 to vector<8x512xf32>
    %12 = arith.maximumf %10, %11 : vector<8x512xf32>
    %13 = arith.truncf %12 : vector<8x512xf32> to vector<8x512xbf16>
    %c0_10 = arith.constant 0 : index
    %c0_11 = arith.constant 0 : index
    %14 = vector.load %arg5[%c0_10, %c0_11] : memref<512x32xbf16, #tpu.memory_space<vmem>>, vector<512x32xbf16>
    %cst_12 = arith.constant dense<0.000000e+00> : vector<8x32xf32>
    %15 = tpu.matmul %13, %14, %cst_12 {dimension_numbers = #tpu.dot_dimension_numbers<[1], [0], [0], [1], [0, 0, 1, 1], [], []>} : vector<8x512xbf16>, vector<512x32xbf16>, vector<8x32xf32> -> vector<8x32xf32>
    %c0_13 = arith.constant 0 : index
    %c0_14 = arith.constant 0 : index
    %16 = vector.load %arg6[%c0_13, %c0_14] : memref<1x32xf32, #tpu.memory_space<vmem>>, vector<1x32xf32>
    %17 = vector.broadcast %16 : vector<1x32xf32> to vector<8x32xf32>
    %18 = arith.addf %15, %17 : vector<8x32xf32>
    %c0_15 = arith.constant 0 : index
    %c0_16 = arith.constant 0 : index
    %19 = vector.load %arg7[%c0_15, %c0_16] : memref<8x32xf32, #tpu.memory_space<vmem>>, vector<8x32xf32>
    tpu.vector_store %arg7[%c0_15, %c0_16], %18 {strides = array<i32>} : memref<8x32xf32, #tpu.memory_space<vmem>>, vector<8x32xf32>,
    return
  }
  func.func @transform_0(%arg0: i32) -> (i32, i32) {
    %c0_i32 = arith.constant 0 : i32
    %c0_i32_0 = arith.constant 0 : i32
    return %arg0, %c0_i32 : i32, i32
  }
  func.func @transform_1(%arg0: i32) -> (i32, i32) {
    %c0_i32 = arith.constant 0 : i32
    %c0_i32_0 = arith.constant 0 : i32
    %c0_i32_1 = arith.constant 0 : i32
    return %c0_i32, %c0_i32_0 : i32, i32
  }
  func.func @transform_2(%arg0: i32) -> (i32, i32) {
    %c0_i32 = arith.constant 0 : i32
    %c0_i32_0 = arith.constant 0 : i32
    %c0_i32_1 = arith.constant 0 : i32
    return %c0_i32, %c0_i32_0 : i32, i32
  }
  func.func @transform_3(%arg0: i32) -> (i32, i32) {
    %c0_i32 = arith.constant 0 : i32
    %c0_i32_0 = arith.constant 0 : i32
    %c0_i32_1 = arith.constant 0 : i32
    return %c0_i32, %c0_i32_0 : i32, i32
  }
  func.func @transform_4(%arg0: i32) -> (i32, i32) {
    %c0_i32 = arith.constant 0 : i32
    %c0_i32_0 = arith.constant 0 : i32
    %c0_i32_1 = arith.constant 0 : i32
    return %c0_i32, %c0_i32_0 : i32, i32
  }
  func.func @transform_5(%arg0: i32) -> (i32, i32) {
    %c0_i32 = arith.constant 0 : i32
    %c0_i32_0 = arith.constant 0 : i32
    %c0_i32_1 = arith.constant 0 : i32
    return %c0_i32, %c0_i32_0 : i32, i32
  }
  func.func @transform_6(%arg0: i32) -> (i32, i32) {
    %c0_i32 = arith.constant 0 : i32
    %c0_i32_0 = arith.constant 0 : i32
    return %arg0, %c0_i32 : i32, i32
  }
}

</mosaic_0001>

<llo_original>
// kernel: tpu_custom_call.1
$region0: #{tpu_custom_call.1}
  #allocation0 [shape = 'u32[]', space=smem, size = 0x4, offset = 0x4, fixed_abs, tag = 'smem constant byte address 0x4 - core index']
  #allocation1 [shape = 'u32[144,128]{1,0:T(1,128)}', space=vmem, size = 0x12000, scoped, tag = 'internal scratch']
  %s0 = inlined_call_operand.vmem [shape: bf16[8,8], index: 0, kind: input, shape index: {}]
  %s1 = inlined_call_operand.vmem [shape: bf16[8,512], index: 1, kind: input, shape index: {}]
  %s2 = inlined_call_operand.hbm [shape: bf16[512,512], index: 2, kind: input, shape index: {}]
  %s3 = inlined_call_operand.vmem [shape: f32[1,512], index: 3, kind: input, shape index: {}]
  %s4 = inlined_call_operand.vmem [shape: bf16[512,32], index: 4, kind: input, shape index: {}]
  %s5 = inlined_call_operand.vmem [shape: f32[1,32], index: 5, kind: input, shape index: {}]
  %s6 = inlined_call_operand.hbm [shape: f32[8,32], index: 6, kind: output, shape index: {}]
  %s7 = sld [smem:[#allocation0]]
  $region38: #{tpu_custom_call.1} parent=0
    _
  %s9 = ssub.s32 1, %s7
  %s10 = scalar_select 0, %s9, %s7
  $region1: #{tpu_custom_call.1} parent=0
    #allocation2 [shape = 'u8[524288]{0}', space=vmem, size = 0x80000, scoped, tag = 'input window, operand 2, single buffered']
    #allocation3 [shape = 's32[1]{0}', space=sflag, size = 0x4, scoped, tag = 'scoped memory for tpu_custom_call.1']
    #allocation4 [shape = 's32[1]{0}', space=sflag, size = 0x4, scoped, tag = 'scoped memory for tpu_custom_call.1']
    #allocation5 [shape = 'u8[4096]{0}', space=vmem, size = 0x1000, scoped, tag = 'output window, operand 0, single buffered']
    %11 = vsyncpa [#allocation3], 0
    %12 = vsyncpa [#allocation4], 0
    // Predicated region
    $region2: #{tpu_custom_call.1} parent=1 // pred_check
      _
    $region3: #{tpu_custom_call.1} parent=1 // pred_check_branch
      %14 = sbr.rel (0) target = $region5
    $region4: #{tpu_custom_call.1} parent=1 // pred_region
      _
    $region5: #{tpu_custom_call.1} parent=1 // pred_fallthru
      _
    // Predicated region
    $region6: #{tpu_custom_call.1} parent=1 // pred_check
      _
    $region7: #{tpu_custom_call.1} parent=1 // pred_check_branch
      %16 = sbr.rel (0) target = $region9
    $region8: #{tpu_custom_call.1} parent=1 // pred_region
      _
    $region9: #{tpu_custom_call.1} parent=1 // pred_fallthru
      _
    // Predicated region
    $region10: #{tpu_custom_call.1} parent=1 // pred_check
      _
    $region11: #{tpu_custom_call.1} parent=1 // pred_check_branch
      %18 = sbr.rel (0) target = $region13
    $region12: #{tpu_custom_call.1} parent=1 // pred_region
      %s20 = ssub.s32 16384, 16384
      %21 = vsyncadd [#allocation3], %s20
      %s22 = sshll.u32 [#allocation2], 4
      %s23 = int_to_ptr.vmem [resolvable:$true] %s22
      %28 = dma.hbm_to_vmem [thread:$0]  %s2, 16384, %s23, [#allocation3], 256, 256, 16
    $region13: #{tpu_custom_call.1} parent=1 // pred_fallthru
      _
    // Predicated region
    $region14: #{tpu_custom_call.1} parent=1 // pred_check
      _
    $region15: #{tpu_custom_call.1} parent=1 // pred_check_branch
      %30 = sbr.rel (0) target = $region17
    $region16: #{tpu_custom_call.1} parent=1 // pred_region
      _
    $region17: #{tpu_custom_call.1} parent=1 // pred_fallthru
      _
    // Predicated region
    $region18: #{tpu_custom_call.1} parent=1 // pred_check
      _
    $region19: #{tpu_custom_call.1} parent=1 // pred_check_branch
      %32 = sbr.rel (0) target = $region21
    $region20: #{tpu_custom_call.1} parent=1 // pred_region
      _
    $region21: #{tpu_custom_call.1} parent=1 // pred_fallthru
      _
    // Predicated region
    $region22: #{tpu_custom_call.1} parent=1 // pred_check
      _
    $region23: #{tpu_custom_call.1} parent=1 // pred_check_branch
      %34 = sbr.rel (0) target = $region25
    $region24: #{tpu_custom_call.1} parent=1 // pred_region
      _
    $region25: #{tpu_custom_call.1} parent=1 // pred_fallthru
      _
    // Predicated region
    $region26: #{tpu_custom_call.1} parent=1 // pred_check
      _
    $region27: #{tpu_custom_call.1} parent=1 // pred_check_branch
      %36 = sbr.rel (0) target = $region29
    $region28: #{tpu_custom_call.1} parent=1 // pred_region
      %37 = dma.done [#allocation3], 16384
    $region29: #{tpu_custom_call.1} parent=1 // pred_fallthru
      _
    %v39 = vld [vmem:[%s0] sm:$0xf]
    %v40 = vld [vmem:[%s1] sm:$0xff]
    %v41 = vld [vmem:[%s1 + $0x8] sm:$0xff]
    %v44 = vunpack.c.l.b16 %v40
    %v45 = vunpack.c.h.b16 %v40
    %v46 = vunpack.c.l.b16 %v41
    %v47 = vunpack.c.h.b16 %v41
    %v48 = vpack.c.b16 %v44, %v44
    %v49 = vpack.c.b16 %v45, %v45
    %v50 = vpack.c.b16 %v46, %v46
    %v51 = vpack.c.b16 %v47, %v47
    %vm52 = vcmask 64512
    %v54 = vsel %vm52, %v39, 0
    %vm56 = vcmask 1043456
    %v58 = vsel %vm56, %v48, 0
    %v61 = vsel %vm56, %v49, 0
    %v64 = vsel %vm56, %v50, 0
    %v67 = vsel %vm56, %v51, 0
    %69 = vmatprep.subr.bf16.mxu0 0
    %70 = vmatpush1.bf16.msra.mxu0 0
    %71 = vmatprep.subr.bf16.mxu0 0
    %72 = vmatpush1.bf16.msra.mxu0 0
    %73 = vmatprep.subr.bf16.mxu0 0
    %74 = vmatpush1.bf16.msra.mxu0 0
    %75 = vmatprep.subr.bf16.mxu0 0
    %76 = vmatpush1.bf16.msra.mxu0 0
    %77 = vmatprep.subr.bf16.mxu0 0
    %78 = vmatpush1.bf16.msra.mxu0 0
    %79 = vmatprep.subr.bf16.mxu0 0
    %80 = vmatpush1.bf16.msra.mxu0 0
    %81 = vmatprep.subr.bf16.mxu0 0
    %82 = vmatpush1.bf16.msra.mxu0 0
    %83 = vmatprep.subr.bf16.mxu0 %v61
    %84 = vmatpush1.bf16.msra.mxu0 %v58
    %85 = vmatprep.subr.bf16.mxu0 0
    %86 = vmatpush2.bf16.msra.mxu0 0
    %87 = vmatprep.subr.bf16.mxu0 0
    %88 = vmatpush2.bf16.msra.mxu0 0
    %89 = vmatprep.subr.bf16.mxu0 0
    %90 = vmatpush2.bf16.msra.mxu0 0
    %91 = vmatprep.subr.bf16.mxu0 0
    %92 = vmatpush2.bf16.msra.mxu0 0
    %93 = vmatprep.subr.bf16.mxu0 0
    %94 = vmatpush2.bf16.msra.mxu0 0
    %95 = vmatprep.subr.bf16.mxu0 0
    %96 = vmatpush2.bf16.msra.mxu0 0
    %97 = vmatprep.subr.bf16.mxu0 0
    %98 = vmatpush2.bf16.msra.mxu0 0
    %99 = vmatprep.subr.bf16.mxu0 0
    %100 = vmatpush2.bf16.msra.mxu0 0
    %101 = vmatprep.mubr.bf16.mxu0 0
    %102 = vmatmul.mubr.bf16.gmra.mxu0 %v54
    %v103 = vpop.f32.mrf.mxu0
    %v104 = vadd.f32 0.0, %v103
    %v105 = vpop.f32.mrf.mxu0
    %v106 = vadd.f32 0.0, %v105
    %v107 = vpop.f32.mrf.mxu0
    %v108 = vpop.f32.mrf.mxu0
    %109 = vdwg.mxu0
    %110 = vmatprep.subr.bf16.mxu0 0
    %111 = vmatpush1.bf16.msra.mxu0 0
    %112 = vmatprep.subr.bf16.mxu0 0
    %113 = vmatpush1.bf16.msra.mxu0 0
    %114 = vmatprep.subr.bf16.mxu0 0
    %115 = vmatpush1.bf16.msra.mxu0 0
    %116 = vmatprep.subr.bf16.mxu0 0
    %117 = vmatpush1.bf16.msra.mxu0 0
    %118 = vmatprep.subr.bf16.mxu0 0
    %119 = vmatpush1.bf16.msra.mxu0 0
    %120 = vmatprep.subr.bf16.mxu0 0
    %121 = vmatpush1.bf16.msra.mxu0 0
    %122 = vmatprep.subr.bf16.mxu0 0
    %123 = vmatpush1.bf16.msra.mxu0 0
    %124 = vmatprep.subr.bf16.mxu0 %v67
    %125 = vmatpush1.bf16.msra.mxu0 %v64
    %126 = vmatprep.subr.bf16.mxu0 0
    %127 = vmatpush2.bf16.msra.mxu0 0
    %128 = vmatprep.subr.bf16.mxu0 0
    %129 = vmatpush2.bf16.msra.mxu0 0
    %130 = vmatprep.subr.bf16.mxu0 0
    %131 = vmatpush2.bf16.msra.mxu0 0
    %132 = vmatprep.subr.bf16.mxu0 0
    %133 = vmatpush2.bf16.msra.mxu0 0
    %134 = vmatprep.subr.bf16.mxu0 0
    %135 = vmatpush2.bf16.msra.mxu0 0
    %136 = vmatprep.subr.bf16.mxu0 0
    %137 = vmatpush2.bf16.msra.mxu0 0
    %138 = vmatprep.subr.bf16.mxu0 0
    %139 = vmatpush2.bf16.msra.mxu0 0
    %140 = vmatprep.subr.bf16.mxu0 0
    %141 = vmatpush2.bf16.msra.mxu0 0
    %142 = vmatprep.mubr.bf16.mxu0 0
    %143 = vmatmul.mubr.bf16.gmra.mxu0 %v54
    %v144 = vpop.f32.mrf.mxu0
    %v145 = vadd.f32 0.0, %v144
    %v146 = vpop.f32.mrf.mxu0
    %v147 = vadd.f32 0.0, %v146
    %v148 = vpop.f32.mrf.mxu0
    %v149 = vpop.f32.mrf.mxu0
    %150 = vdwg.mxu0
    %v151 = vmax.f32 %v104, 0.0
    %v152 = vmax.f32 %v106, 0.0
    %v153 = vmax.f32 %v145, 0.0
    %v154 = vmax.f32 %v147, 0.0
    %v155 = vpack.c.bf16 %v151, %v151
    %v156 = vpack.c.bf16 %v152, %v152
    %v157 = vpack.c.bf16 %v153, %v153
    %v158 = vpack.c.bf16 %v154, %v154
    %v159 = vld [vmem:[#allocation2] sm:$0xff]
    %v160 = vld [vmem:[#allocation2 + $0x8] sm:$0xff]
    %v161 = vld [vmem:[#allocation2 + $0x10] sm:$0xff]
    %v162 = vld [vmem:[#allocation2 + $0x18] sm:$0xff]
    %v163 = vld [vmem:[#allocation2 + $0x20] sm:$0xff]
    %v164 = vld [vmem:[#allocation2 + $0x28] sm:$0xff]
    %v165 = vld [vmem:[#allocation2 + $0x30] sm:$0xff]
    %v166 = vld [vmem:[#allocation2 + $0x38] sm:$0xff]
    %v167 = vld [vmem:[#allocation2 + $0x40] sm:$0xff]
    %v168 = vld [vmem:[#allocation2 + $0x48] sm:$0xff]
    %v169 = vld [vmem:[#allocation2 + $0x50] sm:$0xff]
    %v170 = vld [vmem:[#allocation2 + $0x58] sm:$0xff]
    %v171 = vld [vmem:[#allocation2 + $0x60] sm:$0xff]
    %v172 = vld [vmem:[#allocation2 + $0x68] sm:$0xff]
    %v173 = vld [vmem:[#allocation2 + $0x70] sm:$0xff]
    %v174 = vld [vmem:[#allocation2 + $0x78] sm:$0xff]
    %v175 = vld [vmem:[#allocation2 + $0x80] sm:$0xff]
    %v176 = vld [vmem:[#allocation2 + $0x88] sm:$0xff]
    %v177 = vld [vmem:[#allocation2 + $0x90] sm:$0xff]
    %v178 = vld [vmem:[#allocation2 + $0x98] sm:$0xff]
    %v179 = vld [vmem:[#allocation2 + $0xa0] sm:$0xff]
    %v180 = vld [vmem:[#allocation2 + $0xa8] sm:$0xff]
    %v181 = vld [vmem:[#allocation2 + $0xb0] sm:$0xff]
    %v182 = vld [vmem:[#allocation2 + $0xb8] sm:$0xff]
    %v183 = vld [vmem:[#allocation2 + $0xc0] sm:$0xff]
    %v184 = vld [vmem:[#allocation2 + $0xc8] sm:$0xff]
    %v185 = vld [vmem:[#allocation2 + $0xd0] sm:$0xff]
    %v186 = vld [vmem:[#allocation2 + $0xd8] sm:$0xff]
    %v187 = vld [vmem:[#allocation2 + $0xe0] sm:$0xff]
    %v188 = vld [vmem:[#allocation2 + $0xe8] sm:$0xff]
    %v189 = vld [vmem:[#allocation2 + $0xf0] sm:$0xff]
    %v190 = vld [vmem:[#allocation2 + $0xf8] sm:$0xff]
    %v191 = vld [vmem:[#allocation2 + $0x100] sm:$0xff]
    %v192 = vld [vmem:[#allocation2 + $0x108] sm:$0xff]
    %v193 = vld [vmem:[#allocation2 + $0x110] sm:$0xff]
    %v194 = vld [vmem:[#allocation2 + $0x118] sm:$0xff]
    %v195 = vld [vmem:[#allocation2 + $0x120] sm:$0xff]
    %v196 = vld [vmem:[#allocation2 + $0x128] sm:$0xff]
    %v197 = vld [vmem:[#allocation2 + $0x130] sm:$0xff]
    %v198 = vld [vmem:[#allocation2 + $0x138] sm:$0xff]
    %v199 = vld [vmem:[#allocation2 + $0x140] sm:$0xff]
    %v200 = vld [vmem:[#allocation2 + $0x148] sm:$0xff]
    %v201 = vld [vmem:[#allocation2 + $0x150] sm:$0xff]
    %v202 = vld [vmem:[#allocation2 + $0x158] sm:$0xff]
    %v203 = vld [vmem:[#allocation2 + $0x160] sm:$0xff]
    %v204 = vld [vmem:[#allocation2 + $0x168] sm:$0xff]
    %v205 = vld [vmem:[#allocation2 + $0x170] sm:$0xff]
    %v206 = vld [vmem:[#allocation2 + $0x178] sm:$0xff]
    %v207 = vld [vmem:[#allocation2 + $0x180] sm:$0xff]
    %v208 = vld [vmem:[#allocation2 + $0x188] sm:$0xff]
    %v209 = vld [vmem:[#allocation2 + $0x190] sm:$0xff]
    %v210 = vld [vmem:[#allocation2 + $0x198] sm:$0xff]
    %v211 = vld [vmem:[#allocation2 + $0x1a0] sm:$0xff]
    %v212 = vld [vmem:[#allocation2 + $0x1a8] sm:$0xff]
    %v213 = vld [vmem:[#allocation2 + $0x1b0] sm:$0xff]
    %v214 = vld [vmem:[#allocation2 + $0x1b8] sm:$0xff]
    %v215 = vld [vmem:[#allocation2 + $0x1c0] sm:$0xff]
    %v216 = vld [vmem:[#allocation2 + $0x1c8] sm:$0xff]
    %v217 = vld [vmem:[#allocation2 + $0x1d0] sm:$0xff]
    %v218 = vld [vmem:[#allocation2 + $0x1d8] sm:$0xff]
    %v219 = vld [vmem:[#allocation2 + $0x1e0] sm:$0xff]
    %v220 = vld [vmem:[#allocation2 + $0x1e8] sm:$0xff]
    %v221 = vld [vmem:[#allocation2 + $0x1f0] sm:$0xff]
    %v222 = vld [vmem:[#allocation2 + $0x1f8] sm:$0xff]
    %v223 = vld [vmem:[#allocation2 + $0x200] sm:$0xff]
    %v224 = vld [vmem:[#allocation2 + $0x208] sm:$0xff]
    %v225 = vld [vmem:[#allocation2 + $0x210] sm:$0xff]
    %v226 = vld [vmem:[#allocation2 + $0x218] sm:$0xff]
    %v227 = vld [vmem:[#allocation2 + $0x220] sm:$0xff]
    %v228 = vld [vmem:[#allocation2 + $0x228] sm:$0xff]
    %v229 = vld [vmem:[#allocation2 + $0x230] sm:$0xff]
    %v230 = vld [vmem:[#allocation2 + $0x238] sm:$0xff]
    %v231 = vld [vmem:[#allocation2 + $0x240] sm:$0xff]
    %v232 = vld [vmem:[#allocation2 + $0x248] sm:$0xff]
    %v233 = vld [vmem:[#allocation2 + $0x250] sm:$0xff]
    %v234 = vld [vmem:[#allocation2 + $0x258] sm:$0xff]
    %v235 = vld [vmem:[#allocation2 + $0x260] sm:$0xff]
    %v236 = vld [vmem:[#allocation2 + $0x268] sm:$0xff]
    %v237 = vld [vmem:[#allocation2 + $0x270] sm:$0xff]
    %v238 = vld [vmem:[#allocation2 + $0x278] sm:$0xff]
    %v239 = vld [vmem:[#allocation2 + $0x280] sm:$0xff]
    %v240 = vld [vmem:[#allocation2 + $0x288] sm:$0xff]
    %v241 = vld [vmem:[#allocation2 + $0x290] sm:$0xff]
    %v242 = vld [vmem:[#allocation2 + $0x298] sm:$0xff]
    %v243 = vld [vmem:[#allocation2 + $0x2a0] sm:$0xff]
    %v244 = vld [vmem:[#allocation2 + $0x2a8] sm:$0xff]
    %v245 = vld [vmem:[#allocation2 + $0x2b0] sm:$0xff]
    %v246 = vld [vmem:[#allocation2 + $0x2b8] sm:$0xff]
    %v247 = vld [vmem:[#allocation2 + $0x2c0] sm:$0xff]
    %v248 = vld [vmem:[#allocation2 + $0x2c8] sm:$0xff]
    %v249 = vld [vmem:[#allocation2 + $0x2d0] sm:$0xff]
    %v250 = vld [vmem:[#allocation2 + $0x2d8] sm:$0xff]
    %v251 = vld [vmem:[#allocation2 + $0x2e0] sm:$0xff]
    %v252 = vld [vmem:[#allocation2 + $0x2e8] sm:$0xff]
    %v253 = vld [vmem:[#allocation2 + $0x2f0] sm:$0xff]
    %v254 = vld [vmem:[#allocation2 + $0x2f8] sm:$0xff]
    %v255 = vld [vmem:[#allocation2 + $0x300] sm:$0xff]
    %v256 = vld [vmem:[#allocation2 + $0x308] sm:$0xff]
    %v257 = vld [vmem:[#allocation2 + $0x310] sm:$0xff]
    %v258 = vld [vmem:[#allocation2 + $0x318] sm:$0xff]
    %v259 = vld [vmem:[#allocation2 + $0x320] sm:$0xff]
    %v260 = vld [vmem:[#allocation2 + $0x328] sm:$0xff]
    %v261 = vld [vmem:[#allocation2 + $0x330] sm:$0xff]
    %v262 = vld [vmem:[#allocation2 + $0x338] sm:$0xff]
    %v263 = vld [vmem:[#allocation2 + $0x340] sm:$0xff]
    %v264 = vld [vmem:[#allocation2 + $0x348] sm:$0xff]
    %v265 = vld [vmem:[#allocation2 + $0x350] sm:$0xff]
    %v266 = vld [vmem:[#allocation2 + $0x358] sm:$0xff]
    %v267 = vld [vmem:[#allocation2 + $0x360] sm:$0xff]
    %v268 = vld [vmem:[#allocation2 + $0x368] sm:$0xff]
    %v269 = vld [vmem:[#allocation2 + $0x370] sm:$0xff]
    %v270 = vld [vmem:[#allocation2 + $0x378] sm:$0xff]
    %v271 = vld [vmem:[#allocation2 + $0x380] sm:$0xff]
    %v272 = vld [vmem:[#allocation2 + $0x388] sm:$0xff]
    %v273 = vld [vmem:[#allocation2 + $0x390] sm:$0xff]
    %v274 = vld [vmem:[#allocation2 + $0x398] sm:$0xff]
    %v275 = vld [vmem:[#allocation2 + $0x3a0] sm:$0xff]
    %v276 = vld [vmem:[#allocation2 + $0x3a8] sm:$0xff]
    %v277 = vld [vmem:[#allocation2 + $0x3b0] sm:$0xff]
    %v278 = vld [vmem:[#allocation2 + $0x3b8] sm:$0xff]
    %v279 = vld [vmem:[#allocation2 + $0x3c0] sm:$0xff]
    %v280 = vld [vmem:[#allocation2 + $0x3c8] sm:$0xff]
    %v281 = vld [vmem:[#allocation2 + $0x3d0] sm:$0xff]
    %v282 = vld [vmem:[#allocation2 + $0x3d8] sm:$0xff]
    %v283 = vld [vmem:[#allocation2 + $0x3e0] sm:$0xff]
    %v284 = vld [vmem:[#allocation2 + $0x3e8] sm:$0xff]
    %v285 = vld [vmem:[#allocation2 + $0x3f0] sm:$0xff]
    %v286 = vld [vmem:[#allocation2 + $0x3f8] sm:$0xff]
    %v287 = vld [vmem:[%s3] sm:$0xf]
    %v289 = vlaneseq
    %v290 = vshrl.u32 %v289, 7
    %v291 = vsub.s32 0, %v290
    %v292 = vrot.slane %v287, %v291
    %v293 = vlaneseq
    %v294 = vshrl.u32 %v293, 7
    %v295 = vsub.s32 1, %v294
    %v296 = vrot.slane %v287, %v295
    %v297 = vlaneseq
    %v298 = vshrl.u32 %v297, 7
    %v299 = vsub.s32 2, %v298
    %v300 = vrot.slane %v287, %v299
    %v301 = vlaneseq
    %v302 = vshrl.u32 %v301, 7
    %v303 = vsub.s32 3, %v302
    %v304 = vrot.slane %v287, %v303
    %v437 = vunpack.c.l.b16 %v159
    %v438 = vunpack.c.h.b16 %v159
    %v439 = vunpack.c.l.b16 %v160
    %v440 = vunpack.c.h.b16 %v160
    %v441 = vunpack.c.l.b16 %v161
    %v442 = vunpack.c.h.b16 %v161
    %v443 = vunpack.c.l.b16 %v162
    %v444 = vunpack.c.h.b16 %v162
    %v445 = vunpack.c.l.b16 %v163
    %v446 = vunpack.c.h.b16 %v163
    %v447 = vunpack.c.l.b16 %v164
    %v448 = vunpack.c.h.b16 %v164
    %v449 = vunpack.c.l.b16 %v165
    %v450 = vunpack.c.h.b16 %v165
    %v451 = vunpack.c.l.b16 %v166
    %v452 = vunpack.c.h.b16 %v166
    %v453 = vunpack.c.l.b16 %v167
    %v454 = vunpack.c.h.b16 %v167
    %v455 = vunpack.c.l.b16 %v168
    %v456 = vunpack.c.h.b16 %v168
    %v457 = vunpack.c.l.b16 %v169
    %v458 = vunpack.c.h.b16 %v169
    %v459 = vunpack.c.l.b16 %v170
    %v460 = vunpack.c.h.b16 %v170
    %v461 = vunpack.c.l.b16 %v171
    %v462 = vunpack.c.h.b16 %v171
    %v463 = vunpack.c.l.b16 %v172
    %v464 = vunpack.c.h.b16 %v172
    %v465 = vunpack.c.l.b16 %v173
    %v466 = vunpack.c.h.b16 %v173
    %v467 = vunpack.c.l.b16 %v174
    %v468 = vunpack.c.h.b16 %v174
    %v469 = vunpack.c.l.b16 %v175
    %v470 = vunpack.c.h.b16 %v175
    %v471 = vunpack.c.l.b16 %v176
    %v472 = vunpack.c.h.b16 %v176
    %v473 = vunpack.c.l.b16 %v177
    %v474 = vunpack.c.h.b16 %v177
    %v475 = vunpack.c.l.b16 %v178
    %v476 = vunpack.c.h.b16 %v178
    %v477 = vunpack.c.l.b16 %v179
    %v478 = vunpack.c.h.b16 %v179
    %v479 = vunpack.c.l.b16 %v180
    %v480 = vunpack.c.h.b16 %v180
    %v481 = vunpack.c.l.b16 %v181
    %v482 = vunpack.c.h.b16 %v181
    %v483 = vunpack.c.l.b16 %v182
    %v484 = vunpack.c.h.b16 %v182
    %v485 = vunpack.c.l.b16 %v183
    %v486 = vunpack.c.h.b16 %v183
    %v487 = vunpack.c.l.b16 %v184
    %v488 = vunpack.c.h.b16 %v184
    %v489 = vunpack.c.l.b16 %v185
    %v490 = vunpack.c.h.b16 %v185
    %v491 = vunpack.c.l.b16 %v186
    %v492 = vunpack.c.h.b16 %v186
    %v493 = vunpack.c.l.b16 %v187
    %v494 = vunpack.c.h.b16 %v187
    %v495 = vunpack.c.l.b16 %v188
    %v496 = vunpack.c.h.b16 %v188
    %v497 = vunpack.c.l.b16 %v189
    %v498 = vunpack.c.h.b16 %v189
    %v499 = vunpack.c.l.b16 %v190
    %v500 = vunpack.c.h.b16 %v190
    %v501 = vunpack.c.l.b16 %v191
    %v502 = vunpack.c.h.b16 %v191
    %v503 = vunpack.c.l.b16 %v192
    %v504 = vunpack.c.h.b16 %v192
    %v505 = vunpack.c.l.b16 %v193
    %v506 = vunpack.c.h.b16 %v193
    %v507 = vunpack.c.l.b16 %v194
    %v508 = vunpack.c.h.b16 %v194
    %v509 = vunpack.c.l.b16 %v195
    %v510 = vunpack.c.h.b16 %v195
    %v511 = vunpack.c.l.b16 %v196
    %v512 = vunpack.c.h.b16 %v196
    %v513 = vunpack.c.l.b16 %v197
    %v514 = vunpack.c.h.b16 %v197
    %v515 = vunpack.c.l.b16 %v198
    %v516 = vunpack.c.h.b16 %v198
    %v517 = vunpack.c.l.b16 %v199
    %v518 = vunpack.c.h.b16 %v199
    %v519 = vunpack.c.l.b16 %v200
    %v520 = vunpack.c.h.b16 %v200
    %v521 = vunpack.c.l.b16 %v201
    %v522 = vunpack.c.h.b16 %v201
    %v523 = vunpack.c.l.b16 %v202
    %v524 = vunpack.c.h.b16 %v202
    %v525 = vunpack.c.l.b16 %v203
    %v526 = vunpack.c.h.b16 %v203
    %v527 = vunpack.c.l.b16 %v204
    %v528 = vunpack.c.h.b16 %v204
    %v529 = vunpack.c.l.b16 %v205
    %v530 = vunpack.c.h.b16 %v205
    %v531 = vunpack.c.l.b16 %v206
    %v532 = vunpack.c.h.b16 %v206
    %v533 = vunpack.c.l.b16 %v207
    %v534 = vunpack.c.h.b16 %v207
    %v535 = vunpack.c.l.b16 %v208
    %v536 = vunpack.c.h.b16 %v208
    %v537 = vunpack.c.l.b16 %v209
    %v538 = vunpack.c.h.b16 %v209
    %v539 = vunpack.c.l.b16 %v210
    %v540 = vunpack.c.h.b16 %v210
    %v541 = vunpack.c.l.b16 %v211
    %v542 = vunpack.c.h.b16 %v211
    %v543 = vunpack.c.l.b16 %v212
    %v544 = vunpack.c.h.b16 %v212
    %v545 = vunpack.c.l.b16 %v213
    %v546 = vunpack.c.h.b16 %v213
    %v547 = vunpack.c.l.b16 %v214
    %v548 = vunpack.c.h.b16 %v214
    %v549 = vunpack.c.l.b16 %v215
    %v550 = vunpack.c.h.b16 %v215
    %v551 = vunpack.c.l.b16 %v216
    %v552 = vunpack.c.h.b16 %v216
    %v553 = vunpack.c.l.b16 %v217
    %v554 = vunpack.c.h.b16 %v217
    %v555 = vunpack.c.l.b16 %v218
    %v556 = vunpack.c.h.b16 %v218
    %v557 = vunpack.c.l.b16 %v219
    %v558 = vunpack.c.h.b16 %v219
    %v559 = vunpack.c.l.b16 %v220
    %v560 = vunpack.c.h.b16 %v220
    %v561 = vunpack.c.l.b16 %v221
    %v562 = vunpack.c.h.b16 %v221
    %v563 = vunpack.c.l.b16 %v222
    %v564 = vunpack.c.h.b16 %v222
    %v565 = vunpack.c.l.b16 %v223
    %v566 = vunpack.c.h.b16 %v223
    %v567 = vunpack.c.l.b16 %v224
    %v568 = vunpack.c.h.b16 %v224
    %v569 = vunpack.c.l.b16 %v225
    %v570 = vunpack.c.h.b16 %v225
    %v571 = vunpack.c.l.b16 %v226
    %v572 = vunpack.c.h.b16 %v226
    %v573 = vunpack.c.l.b16 %v227
    %v574 = vunpack.c.h.b16 %v227
    %v575 = vunpack.c.l.b16 %v228
    %v576 = vunpack.c.h.b16 %v228
    %v577 = vunpack.c.l.b16 %v229
    %v578 = vunpack.c.h.b16 %v229
    %v579 = vunpack.c.l.b16 %v230
    %v580 = vunpack.c.h.b16 %v230
    %v581 = vunpack.c.l.b16 %v231
    %v582 = vunpack.c.h.b16 %v231
    %v583 = vunpack.c.l.b16 %v232
    %v584 = vunpack.c.h.b16 %v232
    %v585 = vunpack.c.l.b16 %v233
    %v586 = vunpack.c.h.b16 %v233
    %v587 = vunpack.c.l.b16 %v234
    %v588 = vunpack.c.h.b16 %v234
    %v589 = vunpack.c.l.b16 %v235
    %v590 = vunpack.c.h.b16 %v235
    %v591 = vunpack.c.l.b16 %v236
    %v592 = vunpack.c.h.b16 %v236
    %v593 = vunpack.c.l.b16 %v237
    %v594 = vunpack.c.h.b16 %v237
    %v595 = vunpack.c.l.b16 %v238
    %v596 = vunpack.c.h.b16 %v238
    %v597 = vunpack.c.l.b16 %v239
    %v598 = vunpack.c.h.b16 %v239
    %v599 = vunpack.c.l.b16 %v240
    %v600 = vunpack.c.h.b16 %v240
    %v601 = vunpack.c.l.b16 %v241
    %v602 = vunpack.c.h.b16 %v241
    %v603 = vunpack.c.l.b16 %v242
    %v604 = vunpack.c.h.b16 %v242
    %v605 = vunpack.c.l.b16 %v243
    %v606 = vunpack.c.h.b16 %v243
    %v607 = vunpack.c.l.b16 %v244
    %v608 = vunpack.c.h.b16 %v244
    %v609 = vunpack.c.l.b16 %v245
    %v610 = vunpack.c.h.b16 %v245
    %v611 = vunpack.c.l.b16 %v246
    %v612 = vunpack.c.h.b16 %v246
    %v613 = vunpack.c.l.b16 %v247
    %v614 = vunpack.c.h.b16 %v247
    %v615 = vunpack.c.l.b16 %v248
    %v616 = vunpack.c.h.b16 %v248
    %v617 = vunpack.c.l.b16 %v249
    %v618 = vunpack.c.h.b16 %v249
    %v619 = vunpack.c.l.b16 %v250
    %v620 = vunpack.c.h.b16 %v250
    %v621 = vunpack.c.l.b16 %v251
    %v622 = vunpack.c.h.b16 %v251
    %v623 = vunpack.c.l.b16 %v252
    %v624 = vunpack.c.h.b16 %v252
    %v625 = vunpack.c.l.b16 %v253
    %v626 = vunpack.c.h.b16 %v253
    %v627 = vunpack.c.l.b16 %v254
    %v628 = vunpack.c.h.b16 %v254
    %v629 = vunpack.c.l.b16 %v255
    %v630 = vunpack.c.h.b16 %v255
    %v631 = vunpack.c.l.b16 %v256
    %v632 = vunpack.c.h.b16 %v256
    %v633 = vunpack.c.l.b16 %v257
    %v634 = vunpack.c.h.b16 %v257
    %v635 = vunpack.c.l.b16 %v258
    %v636 = vunpack.c.h.b16 %v258
    %v637 = vunpack.c.l.b16 %v259
    %v638 = vunpack.c.h.b16 %v259
    %v639 = vunpack.c.l.b16 %v260
    %v640 = vunpack.c.h.b16 %v260
    %v641 = vunpack.c.l.b16 %v261
    %v642 = vunpack.c.h.b16 %v261
    %v643 = vunpack.c.l.b16 %v262
    %v644 = vunpack.c.h.b16 %v262
    %v645 = vunpack.c.l.b16 %v263
    %v646 = vunpack.c.h.b16 %v263
    %v647 = vunpack.c.l.b16 %v264
    %v648 = vunpack.c.h.b16 %v264
    %v649 = vunpack.c.l.b16 %v265
    %v650 = vunpack.c.h.b16 %v265
    %v651 = vunpack.c.l.b16 %v266
    %v652 = vunpack.c.h.b16 %v266
    %v653 = vunpack.c.l.b16 %v267
    %v654 = vunpack.c.h.b16 %v267
    %v655 = vunpack.c.l.b16 %v268
    %v656 = vunpack.c.h.b16 %v268
    %v657 = vunpack.c.l.b16 %v269
    %v658 = vunpack.c.h.b16 %v269
    %v659 = vunpack.c.l.b16 %v270
    %v660 = vunpack.c.h.b16 %v270
    %v661 = vunpack.c.l.b16 %v271
    %v662 = vunpack.c.h.b16 %v271
    %v663 = vunpack.c.l.b16 %v272
    %v664 = vunpack.c.h.b16 %v272
    %v665 = vunpack.c.l.b16 %v273
    %v666 = vunpack.c.h.b16 %v273
    %v667 = vunpack.c.l.b16 %v274
    %v668 = vunpack.c.h.b16 %v274
    %v669 = vunpack.c.l.b16 %v275
    %v670 = vunpack.c.h.b16 %v275
    %v671 = vunpack.c.l.b16 %v276
    %v672 = vunpack.c.h.b16 %v276
    %v673 = vunpack.c.l.b16 %v277
    %v674 = vunpack.c.h.b16 %v277
    %v675 = vunpack.c.l.b16 %v278
    %v676 = vunpack.c.h.b16 %v278
    %v677 = vunpack.c.l.b16 %v279
    %v678 = vunpack.c.h.b16 %v279
    %v679 = vunpack.c.l.b16 %v280
    %v680 = vunpack.c.h.b16 %v280
    %v681 = vunpack.c.l.b16 %v281
    %v682 = vunpack.c.h.b16 %v281
    %v683 = vunpack.c.l.b16 %v282
    %v684 = vunpack.c.h.b16 %v282
    %v685 = vunpack.c.l.b16 %v283
    %v686 = vunpack.c.h.b16 %v283
    %v687 = vunpack.c.l.b16 %v284
    %v688 = vunpack.c.h.b16 %v284
    %v689 = vunpack.c.l.b16 %v285
    %v690 = vunpack.c.h.b16 %v285
    %v691 = vunpack.c.l.b16 %v286
    %v692 = vunpack.c.h.b16 %v286
    %v693 = vpack.c.b16 %v441, %v437
    %v694 = vpack.c.b16 %v442, %v438
    %v695 = vpack.c.b16 %v443, %v439
    %v696 = vpack.c.b16 %v444, %v440
    %v697 = vpack.c.b16 %v449, %v445
    %v698 = vpack.c.b16 %v450, %v446
    %v699 = vpack.c.b16 %v451, %v447
    %v700 = vpack.c.b16 %v452, %v448
    %v701 = vpack.c.b16 %v457, %v453
    %v702 = vpack.c.b16 %v458, %v454
    %v703 = vpack.c.b16 %v459, %v455
    %v704 = vpack.c.b16 %v460, %v456
    %v705 = vpack.c.b16 %v465, %v461
    %v706 = vpack.c.b16 %v466, %v462
    %v707 = vpack.c.b16 %v467, %v463
    %v708 = vpack.c.b16 %v468, %v464
    %v709 = vpack.c.b16 %v473, %v469
    %v710 = vpack.c.b16 %v474, %v470
    %v711 = vpack.c.b16 %v475, %v471
    %v712 = vpack.c.b16 %v476, %v472
    %v713 = vpack.c.b16 %v481, %v477
    %v714 = vpack.c.b16 %v482, %v478
    %v715 = vpack.c.b16 %v483, %v479
    %v716 = vpack.c.b16 %v484, %v480
    %v717 = vpack.c.b16 %v489, %v485
    %v718 = vpack.c.b16 %v490, %v486
    %v719 = vpack.c.b16 %v491, %v487
    %v720 = vpack.c.b16 %v492, %v488
    %v721 = vpack.c.b16 %v497, %v493
    %v722 = vpack.c.b16 %v498, %v494
    %v723 = vpack.c.b16 %v499, %v495
    %v724 = vpack.c.b16 %v500, %v496
    %v725 = vpack.c.b16 %v505, %v501
    %v726 = vpack.c.b16 %v506, %v502
    %v727 = vpack.c.b16 %v507, %v503
    %v728 = vpack.c.b16 %v508, %v504
    %v729 = vpack.c.b16 %v513, %v509
    %v730 = vpack.c.b16 %v514, %v510
    %v731 = vpack.c.b16 %v515, %v511
    %v732 = vpack.c.b16 %v516, %v512
    %v733 = vpack.c.b16 %v521, %v517
    %v734 = vpack.c.b16 %v522, %v518
    %v735 = vpack.c.b16 %v523, %v519
    %v736 = vpack.c.b16 %v524, %v520
    %v737 = vpack.c.b16 %v529, %v525
    %v738 = vpack.c.b16 %v530, %v526
    %v739 = vpack.c.b16 %v531, %v527
    %v740 = vpack.c.b16 %v532, %v528
    %v741 = vpack.c.b16 %v537, %v533
    %v742 = vpack.c.b16 %v538, %v534
    %v743 = vpack.c.b16 %v539, %v535
    %v744 = vpack.c.b16 %v540, %v536
    %v745 = vpack.c.b16 %v545, %v541
    %v746 = vpack.c.b16 %v546, %v542
    %v747 = vpack.c.b16 %v547, %v543
    %v748 = vpack.c.b16 %v548, %v544
    %v749 = vpack.c.b16 %v553, %v549
    %v750 = vpack.c.b16 %v554, %v550
    %v751 = vpack.c.b16 %v555, %v551
    %v752 = vpack.c.b16 %v556, %v552
    %v753 = vpack.c.b16 %v561, %v557
    %v754 = vpack.c.b16 %v562, %v558
    %v755 = vpack.c.b16 %v563, %v559
    %v756 = vpack.c.b16 %v564, %v560
    %v757 = vpack.c.b16 %v569, %v565
    %v758 = vpack.c.b16 %v570, %v566
    %v759 = vpack.c.b16 %v571, %v567
    %v760 = vpack.c.b16 %v572, %v568
    %v761 = vpack.c.b16 %v577, %v573
    %v762 = vpack.c.b16 %v578, %v574
    %v763 = vpack.c.b16 %v579, %v575
    %v764 = vpack.c.b16 %v580, %v576
    %v765 = vpack.c.b16 %v585, %v581
    %v766 = vpack.c.b16 %v586, %v582
    %v767 = vpack.c.b16 %v587, %v583
    %v768 = vpack.c.b16 %v588, %v584
    %v769 = vpack.c.b16 %v593, %v589
    %v770 = vpack.c.b16 %v594, %v590
    %v771 = vpack.c.b16 %v595, %v591
    %v772 = vpack.c.b16 %v596, %v592
    %v773 = vpack.c.b16 %v601, %v597
    %v774 = vpack.c.b16 %v602, %v598
    %v775 = vpack.c.b16 %v603, %v599
    %v776 = vpack.c.b16 %v604, %v600
    %v777 = vpack.c.b16 %v609, %v605
    %v778 = vpack.c.b16 %v610, %v606
    %v779 = vpack.c.b16 %v611, %v607
    %v780 = vpack.c.b16 %v612, %v608
    %v781 = vpack.c.b16 %v617, %v613
    %v782 = vpack.c.b16 %v618, %v614
    %v783 = vpack.c.b16 %v619, %v615
    %v784 = vpack.c.b16 %v620, %v616
    %v785 = vpack.c.b16 %v625, %v621
    %v786 = vpack.c.b16 %v626, %v622
    %v787 = vpack.c.b16 %v627, %v623
    %v788 = vpack.c.b16 %v628, %v624
    %v789 = vpack.c.b16 %v633, %v629
    %v790 = vpack.c.b16 %v634, %v630
    %v791 = vpack.c.b16 %v635, %v631
    %v792 = vpack.c.b16 %v636, %v632
    %v793 = vpack.c.b16 %v641, %v637
    %v794 = vpack.c.b16 %v642, %v638
    %v795 = vpack.c.b16 %v643, %v639
    %v796 = vpack.c.b16 %v644, %v640
    %v797 = vpack.c.b16 %v649, %v645
    %v798 = vpack.c.b16 %v650, %v646
    %v799 = vpack.c.b16 %v651, %v647
    %v800 = vpack.c.b16 %v652, %v648
    %v801 = vpack.c.b16 %v657, %v653
    %v802 = vpack.c.b16 %v658, %v654
    %v803 = vpack.c.b16 %v659, %v655
    %v804 = vpack.c.b16 %v660, %v656
    %v805 = vpack.c.b16 %v665, %v661
    %v806 = vpack.c.b16 %v666, %v662
    %v807 = vpack.c.b16 %v667, %v663
    %v808 = vpack.c.b16 %v668, %v664
    %v809 = vpack.c.b16 %v673, %v669
    %v810 = vpack.c.b16 %v674, %v670
    %v811 = vpack.c.b16 %v675, %v671
    %v812 = vpack.c.b16 %v676, %v672
    %v813 = vpack.c.b16 %v681, %v677
    %v814 = vpack.c.b16 %v682, %v678
    %v815 = vpack.c.b16 %v683, %v679
    %v816 = vpack.c.b16 %v684, %v680
    %v817 = vpack.c.b16 %v689, %v685
    %v818 = vpack.c.b16 %v690, %v686
    %v819 = vpack.c.b16 %v691, %v687
    %v820 = vpack.c.b16 %v692, %v688
    %949 = vmatprep.subr.bf16.mxu0 %v722
    %950 = vmatpush1.bf16.msra.mxu0 %v721
    %951 = vmatprep.subr.bf16.mxu0 %v718
    %952 = vmatpush1.bf16.msra.mxu0 %v717
    %953 = vmatprep.subr.bf16.mxu0 %v714
    %954 = vmatpush1.bf16.msra.mxu0 %v713
    %955 = vmatprep.subr.bf16.mxu0 %v710
    %956 = vmatpush1.bf16.msra.mxu0 %v709
    %957 = vmatprep.subr.bf16.mxu0 %v706
    %958 = vmatpush1.bf16.msra.mxu0 %v705
    %959 = vmatprep.subr.bf16.mxu0 %v702
    %960 = vmatpush1.bf16.msra.mxu0 %v701
    %961 = vmatprep.subr.bf16.mxu0 %v698
    %962 = vmatpush1.bf16.msra.mxu0 %v697
    %963 = vmatprep.subr.bf16.mxu0 %v694
    %964 = vmatpush1.bf16.msra.mxu0 %v693
    %965 = vmatprep.subr.bf16.mxu0 %v754
    %966 = vmatpush2.bf16.msra.mxu0 %v753
    %967 = vmatprep.subr.bf16.mxu0 %v750
    %968 = vmatpush2.bf16.msra.mxu0 %v749
    %969 = vmatprep.subr.bf16.mxu0 %v746
    %970 = vmatpush2.bf16.msra.mxu0 %v745
    %971 = vmatprep.subr.bf16.mxu0 %v742
    %972 = vmatpush2.bf16.msra.mxu0 %v741
    %973 = vmatprep.subr.bf16.mxu0 %v738
    %974 = vmatpush2.bf16.msra.mxu0 %v737
    %975 = vmatprep.subr.bf16.mxu0 %v734
    %976 = vmatpush2.bf16.msra.mxu0 %v733
    %977 = vmatprep.subr.bf16.mxu0 %v730
    %978 = vmatpush2.bf16.msra.mxu0 %v729
    %979 = vmatprep.subr.bf16.mxu0 %v726
    %980 = vmatpush2.bf16.msra.mxu0 %v725
    %981 = vmatprep.mubr.bf16.mxu0 %v156
    %982 = vmatmul.mubr.bf16.gmra.mxu0 %v155
    %v983 = vpop.f32.mrf.mxu0
    %v984 = vadd.f32 %v292, %v983
    %v985 = vpop.f32.mrf.mxu0
    %v986 = vadd.f32 %v296, %v985
    %v987 = vpop.f32.mrf.mxu0
    %v988 = vpop.f32.mrf.mxu0
    %989 = vdwg.mxu0
    %990 = vmatprep.subr.bf16.mxu0 %v786
    %991 = vmatpush1.bf16.msra.mxu0 %v785
    %992 = vmatprep.subr.bf16.mxu0 %v782
    %993 = vmatpush1.bf16.msra.mxu0 %v781
    %994 = vmatprep.subr.bf16.mxu0 %v778
    %995 = vmatpush1.bf16.msra.mxu0 %v777
    %996 = vmatprep.subr.bf16.mxu0 %v774
    %997 = vmatpush1.bf16.msra.mxu0 %v773
    %998 = vmatprep.subr.bf16.mxu0 %v770
    %999 = vmatpush1.bf16.msra.mxu0 %v769
    %1000 = vmatprep.subr.bf16.mxu0 %v766
    %1001 = vmatpush1.bf16.msra.mxu0 %v765
    %1002 = vmatprep.subr.bf16.mxu0 %v762
    %1003 = vmatpush1.bf16.msra.mxu0 %v761
    %1004 = vmatprep.subr.bf16.mxu0 %v758
    %1005 = vmatpush1.bf16.msra.mxu0 %v757
    %1006 = vmatprep.subr.bf16.mxu0 %v818
    %1007 = vmatpush2.bf16.msra.mxu0 %v817
    %1008 = vmatprep.subr.bf16.mxu0 %v814
    %1009 = vmatpush2.bf16.msra.mxu0 %v813
    %1010 = vmatprep.subr.bf16.mxu0 %v810
    %1011 = vmatpush2.bf16.msra.mxu0 %v809
    %1012 = vmatprep.subr.bf16.mxu0 %v806
    %1013 = vmatpush2.bf16.msra.mxu0 %v805
    %1014 = vmatprep.subr.bf16.mxu0 %v802
    %1015 = vmatpush2.bf16.msra.mxu0 %v801
    %1016 = vmatprep.subr.bf16.mxu0 %v798
    %1017 = vmatpush2.bf16.msra.mxu0 %v797
    %1018 = vmatprep.subr.bf16.mxu0 %v794
    %1019 = vmatpush2.bf16.msra.mxu0 %v793
    %1020 = vmatprep.subr.bf16.mxu0 %v790
    %1021 = vmatpush2.bf16.msra.mxu0 %v789
    %1022 = vmatprep.mubr.bf16.mxu0 %v158
    %1023 = vmatmul.mubr.bf16.gmra.mxu0 %v157
    %v1024 = vpop.f32.mrf.mxu0
    %v1025 = vadd.f32 %v984, %v1024
    %v1026 = vpop.f32.mrf.mxu0
    %v1027 = vadd.f32 %v986, %v1026
    %v1028 = vpop.f32.mrf.mxu0
    %v1029 = vpop.f32.mrf.mxu0
    %1030 = vdwg.mxu0
    %1031 = vmatprep.subr.bf16.mxu0 %v724
    %1032 = vmatpush1.bf16.msra.mxu0 %v723
    %1033 = vmatprep.subr.bf16.mxu0 %v720
    %1034 = vmatpush1.bf16.msra.mxu0 %v719
    %1035 = vmatprep.subr.bf16.mxu0 %v716
    %1036 = vmatpush1.bf16.msra.mxu0 %v715
    %1037 = vmatprep.subr.bf16.mxu0 %v712
    %1038 = vmatpush1.bf16.msra.mxu0 %v711
    %1039 = vmatprep.subr.bf16.mxu0 %v708
    %1040 = vmatpush1.bf16.msra.mxu0 %v707
    %1041 = vmatprep.subr.bf16.mxu0 %v704
    %1042 = vmatpush1.bf16.msra.mxu0 %v703
    %1043 = vmatprep.subr.bf16.mxu0 %v700
    %1044 = vmatpush1.bf16.msra.mxu0 %v699
    %1045 = vmatprep.subr.bf16.mxu0 %v696
    %1046 = vmatpush1.bf16.msra.mxu0 %v695
    %1047 = vmatprep.subr.bf16.mxu0 %v756
    %1048 = vmatpush2.bf16.msra.mxu0 %v755
    %1049 = vmatprep.subr.bf16.mxu0 %v752
    %1050 = vmatpush2.bf16.msra.mxu0 %v751
    %1051 = vmatprep.subr.bf16.mxu0 %v748
    %1052 = vmatpush2.bf16.msra.mxu0 %v747
    %1053 = vmatprep.subr.bf16.mxu0 %v744
    %1054 = vmatpush2.bf16.msra.mxu0 %v743
    %1055 = vmatprep.subr.bf16.mxu0 %v740
    %1056 = vmatpush2.bf16.msra.mxu0 %v739
    %1057 = vmatprep.subr.bf16.mxu0 %v736
    %1058 = vmatpush2.bf16.msra.mxu0 %v735
    %1059 = vmatprep.subr.bf16.mxu0 %v732
    %1060 = vmatpush2.bf16.msra.mxu0 %v731
    %1061 = vmatprep.subr.bf16.mxu0 %v728
    %1062 = vmatpush2.bf16.msra.mxu0 %v727
    %1063 = vmatprep.mubr.bf16.mxu0 %v156
    %1064 = vmatmul.mubr.bf16.gmra.mxu0 %v155
    %v1065 = vpop.f32.mrf.mxu0
    %v1066 = vadd.f32 %v300, %v1065
    %v1067 = vpop.f32.mrf.mxu0
    %v1068 = vadd.f32 %v304, %v1067
    %v1069 = vpop.f32.mrf.mxu0
    %v1070 = vpop.f32.mrf.mxu0
    %1071 = vdwg.mxu0
    %1072 = vmatprep.subr.bf16.mxu0 %v788
    %1073 = vmatpush1.bf16.msra.mxu0 %v787
    %1074 = vmatprep.subr.bf16.mxu0 %v784
    %1075 = vmatpush1.bf16.msra.mxu0 %v783
    %1076 = vmatprep.subr.bf16.mxu0 %v780
    %1077 = vmatpush1.bf16.msra.mxu0 %v779
    %1078 = vmatprep.subr.bf16.mxu0 %v776
    %1079 = vmatpush1.bf16.msra.mxu0 %v775
    %1080 = vmatprep.subr.bf16.mxu0 %v772
    %1081 = vmatpush1.bf16.msra.mxu0 %v771
    %1082 = vmatprep.subr.bf16.mxu0 %v768
    %1083 = vmatpush1.bf16.msra.mxu0 %v767
    %1084 = vmatprep.subr.bf16.mxu0 %v764
    %1085 = vmatpush1.bf16.msra.mxu0 %v763
    %1086 = vmatprep.subr.bf16.mxu0 %v760
    %1087 = vmatpush1.bf16.msra.mxu0 %v759
    %1088 = vmatprep.subr.bf16.mxu0 %v820
    %1089 = vmatpush2.bf16.msra.mxu0 %v819
    %1090 = vmatprep.subr.bf16.mxu0 %v816
    %1091 = vmatpush2.bf16.msra.mxu0 %v815
    %1092 = vmatprep.subr.bf16.mxu0 %v812
    %1093 = vmatpush2.bf16.msra.mxu0 %v811
    %1094 = vmatprep.subr.bf16.mxu0 %v808
    %1095 = vmatpush2.bf16.msra.mxu0 %v807
    %1096 = vmatprep.subr.bf16.mxu0 %v804
    %1097 = vmatpush2.bf16.msra.mxu0 %v803
    %1098 = vmatprep.subr.bf16.mxu0 %v800
    %1099 = vmatpush2.bf16.msra.mxu0 %v799
    %1100 = vmatprep.subr.bf16.mxu0 %v796
    %1101 = vmatpush2.bf16.msra.mxu0 %v795
    %1102 = vmatprep.subr.bf16.mxu0 %v792
    %1103 = vmatpush2.bf16.msra.mxu0 %v791
    %1104 = vmatprep.mubr.bf16.mxu0 %v158
    %1105 = vmatmul.mubr.bf16.gmra.mxu0 %v157
    %v1106 = vpop.f32.mrf.mxu0
    %v1107 = vadd.f32 %v1066, %v1106
    %v1108 = vpop.f32.mrf.mxu0
    %v1109 = vadd.f32 %v1068, %v1108
    %v1110 = vpop.f32.mrf.mxu0
    %v1111 = vpop.f32.mrf.mxu0
    %1112 = vdwg.mxu0
    %v1113 = vmax.f32 %v1025, 0.0
    %v1114 = vmax.f32 %v1027, 0.0
    %v1115 = vmax.f32 %v1107, 0.0
    %v1116 = vmax.f32 %v1109, 0.0
    %v1117 = vpack.c.bf16 %v1113, %v1113
    %v1118 = vpack.c.bf16 %v1114, %v1114
    %v1119 = vpack.c.bf16 %v1115, %v1115
    %v1120 = vpack.c.bf16 %v1116, %v1116
    %v1121 = vld [vmem:[%s4] sm:$0xf]
    %v1122 = vld [vmem:[%s4 + $0x4] sm:$0xf]
    %v1123 = vld [vmem:[%s4 + $0x8] sm:$0xf]
    %v1124 = vld [vmem:[%s4 + $0xc] sm:$0xf]
    %v1125 = vld [vmem:[%s4 + $0x10] sm:$0xf]
    %v1126 = vld [vmem:[%s4 + $0x14] sm:$0xf]
    %v1127 = vld [vmem:[%s4 + $0x18] sm:$0xf]
    %v1128 = vld [vmem:[%s4 + $0x1c] sm:$0xf]
    %v1129 = vld [vmem:[%s4 + $0x20] sm:$0xf]
    %v1130 = vld [vmem:[%s4 + $0x24] sm:$0xf]
    %v1131 = vld [vmem:[%s4 + $0x28] sm:$0xf]
    %v1132 = vld [vmem:[%s4 + $0x2c] sm:$0xf]
    %v1133 = vld [vmem:[%s4 + $0x30] sm:$0xf]
    %v1134 = vld [vmem:[%s4 + $0x34] sm:$0xf]
    %v1135 = vld [vmem:[%s4 + $0x38] sm:$0xf]
    %v1136 = vld [vmem:[%s4 + $0x3c] sm:$0xf]
    %v1137 = vld [vmem:[%s4 + $0x40] sm:$0xf]
    %v1138 = vld [vmem:[%s4 + $0x44] sm:$0xf]
    %v1139 = vld [vmem:[%s4 + $0x48] sm:$0xf]
    %v1140 = vld [vmem:[%s4 + $0x4c] sm:$0xf]
    %v1141 = vld [vmem:[%s4 + $0x50] sm:$0xf]
    %v1142 = vld [vmem:[%s4 + $0x54] sm:$0xf]
    %v1143 = vld [vmem:[%s4 + $0x58] sm:$0xf]
    %v1144 = vld [vmem:[%s4 + $0x5c] sm:$0xf]
    %v1145 = vld [vmem:[%s4 + $0x60] sm:$0xf]
    %v1146 = vld [vmem:[%s4 + $0x64] sm:$0xf]
    %v1147 = vld [vmem:[%s4 + $0x68] sm:$0xf]
    %v1148 = vld [vmem:[%s4 + $0x6c] sm:$0xf]
    %v1149 = vld [vmem:[%s4 + $0x70] sm:$0xf]
    %v1150 = vld [vmem:[%s4 + $0x74] sm:$0xf]
    %v1151 = vld [vmem:[%s4 + $0x78] sm:$0xf]
    %v1152 = vld [vmem:[%s4 + $0x7c] sm:$0xf]
    %v1153 = vld [vmem:[%s4 + $0x80] sm:$0xf]
    %v1154 = vld [vmem:[%s4 + $0x84] sm:$0xf]
    %v1155 = vld [vmem:[%s4 + $0x88] sm:$0xf]
    %v1156 = vld [vmem:[%s4 + $0x8c] sm:$0xf]
    %v1157 = vld [vmem:[%s4 + $0x90] sm:$0xf]
    %v1158 = vld [vmem:[%s4 + $0x94] sm:$0xf]
    %v1159 = vld [vmem:[%s4 + $0x98] sm:$0xf]
    %v1160 = vld [vmem:[%s4 + $0x9c] sm:$0xf]
    %v1161 = vld [vmem:[%s4 + $0xa0] sm:$0xf]
    %v1162 = vld [vmem:[%s4 + $0xa4] sm:$0xf]
    %v1163 = vld [vmem:[%s4 + $0xa8] sm:$0xf]
    %v1164 = vld [vmem:[%s4 + $0xac] sm:$0xf]
    %v1165 = vld [vmem:[%s4 + $0xb0] sm:$0xf]
    %v1166 = vld [vmem:[%s4 + $0xb4] sm:$0xf]
    %v1167 = vld [vmem:[%s4 + $0xb8] sm:$0xf]
    %v1168 = vld [vmem:[%s4 + $0xbc] sm:$0xf]
    %v1169 = vld [vmem:[%s4 + $0xc0] sm:$0xf]
    %v1170 = vld [vmem:[%s4 + $0xc4] sm:$0xf]
    %v1171 = vld [vmem:[%s4 + $0xc8] sm:$0xf]
    %v1172 = vld [vmem:[%s4 + $0xcc] sm:$0xf]
    %v1173 = vld [vmem:[%s4 + $0xd0] sm:$0xf]
    %v1174 = vld [vmem:[%s4 + $0xd4] sm:$0xf]
    %v1175 = vld [vmem:[%s4 + $0xd8] sm:$0xf]
    %v1176 = vld [vmem:[%s4 + $0xdc] sm:$0xf]
    %v1177 = vld [vmem:[%s4 + $0xe0] sm:$0xf]
    %v1178 = vld [vmem:[%s4 + $0xe4] sm:$0xf]
    %v1179 = vld [vmem:[%s4 + $0xe8] sm:$0xf]
    %v1180 = vld [vmem:[%s4 + $0xec] sm:$0xf]
    %v1181 = vld [vmem:[%s4 + $0xf0] sm:$0xf]
    %v1182 = vld [vmem:[%s4 + $0xf4] sm:$0xf]
    %v1183 = vld [vmem:[%s4 + $0xf8] sm:$0xf]
    %v1184 = vld [vmem:[%s4 + $0xfc] sm:$0xf]
    %v1185 = vld [vmem:[%s5] sm:$0x1]
    %v1187 = vlaneseq
    %v1188 = vshrl.u32 %v1187, 7
    %v1189 = vsub.s32 0, %v1188
    %v1190 = vrot.slane %v1185, %v1189
    %v1256 = vunpack.c.l.b16 %v1121
    %v1257 = vunpack.c.l.b16 %v1122
    %v1258 = vunpack.c.l.b16 %v1123
    %v1259 = vunpack.c.l.b16 %v1124
    %v1260 = vunpack.c.l.b16 %v1125
    %v1261 = vunpack.c.l.b16 %v1126
    %v1262 = vunpack.c.l.b16 %v1127
    %v1263 = vunpack.c.l.b16 %v1128
    %v1264 = vunpack.c.l.b16 %v1129
    %v1265 = vunpack.c.l.b16 %v1130
    %v1266 = vunpack.c.l.b16 %v1131
    %v1267 = vunpack.c.l.b16 %v1132
    %v1268 = vunpack.c.l.b16 %v1133
    %v1269 = vunpack.c.l.b16 %v1134
    %v1270 = vunpack.c.l.b16 %v1135
    %v1271 = vunpack.c.l.b16 %v1136
    %v1272 = vunpack.c.l.b16 %v1137
    %v1273 = vunpack.c.l.b16 %v1138
    %v1274 = vunpack.c.l.b16 %v1139
    %v1275 = vunpack.c.l.b16 %v1140
    %v1276 = vunpack.c.l.b16 %v1141
    %v1277 = vunpack.c.l.b16 %v1142
    %v1278 = vunpack.c.l.b16 %v1143
    %v1279 = vunpack.c.l.b16 %v1144
    %v1280 = vunpack.c.l.b16 %v1145
    %v1281 = vunpack.c.l.b16 %v1146
    %v1282 = vunpack.c.l.b16 %v1147
    %v1283 = vunpack.c.l.b16 %v1148
    %v1284 = vunpack.c.l.b16 %v1149
    %v1285 = vunpack.c.l.b16 %v1150
    %v1286 = vunpack.c.l.b16 %v1151
    %v1287 = vunpack.c.l.b16 %v1152
    %v1288 = vunpack.c.l.b16 %v1153
    %v1289 = vunpack.c.l.b16 %v1154
    %v1290 = vunpack.c.l.b16 %v1155
    %v1291 = vunpack.c.l.b16 %v1156
    %v1292 = vunpack.c.l.b16 %v1157
    %v1293 = vunpack.c.l.b16 %v1158
    %v1294 = vunpack.c.l.b16 %v1159
    %v1295 = vunpack.c.l.b16 %v1160
    %v1296 = vunpack.c.l.b16 %v1161
    %v1297 = vunpack.c.l.b16 %v1162
    %v1298 = vunpack.c.l.b16 %v1163
    %v1299 = vunpack.c.l.b16 %v1164
    %v1300 = vunpack.c.l.b16 %v1165
    %v1301 = vunpack.c.l.b16 %v1166
    %v1302 = vunpack.c.l.b16 %v1167
    %v1303 = vunpack.c.l.b16 %v1168
    %v1304 = vunpack.c.l.b16 %v1169
    %v1305 = vunpack.c.l.b16 %v1170
    %v1306 = vunpack.c.l.b16 %v1171
    %v1307 = vunpack.c.l.b16 %v1172
    %v1308 = vunpack.c.l.b16 %v1173
    %v1309 = vunpack.c.l.b16 %v1174
    %v1310 = vunpack.c.l.b16 %v1175
    %v1311 = vunpack.c.l.b16 %v1176
    %v1312 = vunpack.c.l.b16 %v1177
    %v1313 = vunpack.c.l.b16 %v1178
    %v1314 = vunpack.c.l.b16 %v1179
    %v1315 = vunpack.c.l.b16 %v1180
    %v1316 = vunpack.c.l.b16 %v1181
    %v1317 = vunpack.c.l.b16 %v1182
    %v1318 = vunpack.c.l.b16 %v1183
    %v1319 = vunpack.c.l.b16 %v1184
    %v1320 = vpack.c.b16 %v1257, %v1256
    %v1321 = vpack.c.b16 %v1259, %v1258
    %v1322 = vpack.c.b16 %v1261, %v1260
    %v1323 = vpack.c.b16 %v1263, %v1262
    %v1324 = vpack.c.b16 %v1265, %v1264
    %v1325 = vpack.c.b16 %v1267, %v1266
    %v1326 = vpack.c.b16 %v1269, %v1268
    %v1327 = vpack.c.b16 %v1271, %v1270
    %v1328 = vpack.c.b16 %v1273, %v1272
    %v1329 = vpack.c.b16 %v1275, %v1274
    %v1330 = vpack.c.b16 %v1277, %v1276
    %v1331 = vpack.c.b16 %v1279, %v1278
    %v1332 = vpack.c.b16 %v1281, %v1280
    %v1333 = vpack.c.b16 %v1283, %v1282
    %v1334 = vpack.c.b16 %v1285, %v1284
    %v1335 = vpack.c.b16 %v1287, %v1286
    %v1336 = vpack.c.b16 %v1289, %v1288
    %v1337 = vpack.c.b16 %v1291, %v1290
    %v1338 = vpack.c.b16 %v1293, %v1292
    %v1339 = vpack.c.b16 %v1295, %v1294
    %v1340 = vpack.c.b16 %v1297, %v1296
    %v1341 = vpack.c.b16 %v1299, %v1298
    %v1342 = vpack.c.b16 %v1301, %v1300
    %v1343 = vpack.c.b16 %v1303, %v1302
    %v1344 = vpack.c.b16 %v1305, %v1304
    %v1345 = vpack.c.b16 %v1307, %v1306
    %v1346 = vpack.c.b16 %v1309, %v1308
    %v1347 = vpack.c.b16 %v1311, %v1310
    %v1348 = vpack.c.b16 %v1313, %v1312
    %v1349 = vpack.c.b16 %v1315, %v1314
    %v1350 = vpack.c.b16 %v1317, %v1316
    %v1351 = vpack.c.b16 %v1319, %v1318
    %1384 = vmatprep.subr.bf16.mxu0 0
    %1385 = vmatpush1.bf16.msra.mxu0 %v1327
    %1386 = vmatprep.subr.bf16.mxu0 0
    %1387 = vmatpush1.bf16.msra.mxu0 %v1326
    %1388 = vmatprep.subr.bf16.mxu0 0
    %1389 = vmatpush1.bf16.msra.mxu0 %v1325
    %1390 = vmatprep.subr.bf16.mxu0 0
    %1391 = vmatpush1.bf16.msra.mxu0 %v1324
    %1392 = vmatprep.subr.bf16.mxu0 0
    %1393 = vmatpush1.bf16.msra.mxu0 %v1323
    %1394 = vmatprep.subr.bf16.mxu0 0
    %1395 = vmatpush1.bf16.msra.mxu0 %v1322
    %1396 = vmatprep.subr.bf16.mxu0 0
    %1397 = vmatpush1.bf16.msra.mxu0 %v1321
    %1398 = vmatprep.subr.bf16.mxu0 0
    %1399 = vmatpush1.bf16.msra.mxu0 %v1320
    %1400 = vmatprep.subr.bf16.mxu0 0
    %1401 = vmatpush2.bf16.msra.mxu0 %v1335
    %1402 = vmatprep.subr.bf16.mxu0 0
    %1403 = vmatpush2.bf16.msra.mxu0 %v1334
    %1404 = vmatprep.subr.bf16.mxu0 0
    %1405 = vmatpush2.bf16.msra.mxu0 %v1333
    %1406 = vmatprep.subr.bf16.mxu0 0
    %1407 = vmatpush2.bf16.msra.mxu0 %v1332
    %1408 = vmatprep.subr.bf16.mxu0 0
    %1409 = vmatpush2.bf16.msra.mxu0 %v1331
    %1410 = vmatprep.subr.bf16.mxu0 0
    %1411 = vmatpush2.bf16.msra.mxu0 %v1330
    %1412 = vmatprep.subr.bf16.mxu0 0
    %1413 = vmatpush2.bf16.msra.mxu0 %v1329
    %1414 = vmatprep.subr.bf16.mxu0 0
    %1415 = vmatpush2.bf16.msra.mxu0 %v1328
    %1416 = vmatprep.mubr.bf16.mxu0 %v1118
    %1417 = vmatmul.mubr.bf16.gmra.mxu0 %v1117
    %v1418 = vpop.f32.mrf.mxu0
    %v1419 = vadd.f32 %v1190, %v1418
    %v1420 = vpop.f32.mrf.mxu0
    %v1421 = vpop.f32.mrf.mxu0
    %v1422 = vpop.f32.mrf.mxu0
    %1423 = vdwg.mxu0
    %1424 = vmatprep.subr.bf16.mxu0 0
    %1425 = vmatpush1.bf16.msra.mxu0 %v1343
    %1426 = vmatprep.subr.bf16.mxu0 0
    %1427 = vmatpush1.bf16.msra.mxu0 %v1342
    %1428 = vmatprep.subr.bf16.mxu0 0
    %1429 = vmatpush1.bf16.msra.mxu0 %v1341
    %1430 = vmatprep.subr.bf16.mxu0 0
    %1431 = vmatpush1.bf16.msra.mxu0 %v1340
    %1432 = vmatprep.subr.bf16.mxu0 0
    %1433 = vmatpush1.bf16.msra.mxu0 %v1339
    %1434 = vmatprep.subr.bf16.mxu0 0
    %1435 = vmatpush1.bf16.msra.mxu0 %v1338
    %1436 = vmatprep.subr.bf16.mxu0 0
    %1437 = vmatpush1.bf16.msra.mxu0 %v1337
    %1438 = vmatprep.subr.bf16.mxu0 0
    %1439 = vmatpush1.bf16.msra.mxu0 %v1336
    %1440 = vmatprep.subr.bf16.mxu0 0
    %1441 = vmatpush2.bf16.msra.mxu0 %v1351
    %1442 = vmatprep.subr.bf16.mxu0 0
    %1443 = vmatpush2.bf16.msra.mxu0 %v1350
    %1444 = vmatprep.subr.bf16.mxu0 0
    %1445 = vmatpush2.bf16.msra.mxu0 %v1349
    %1446 = vmatprep.subr.bf16.mxu0 0
    %1447 = vmatpush2.bf16.msra.mxu0 %v1348
    %1448 = vmatprep.subr.bf16.mxu0 0
    %1449 = vmatpush2.bf16.msra.mxu0 %v1347
    %1450 = vmatprep.subr.bf16.mxu0 0
    %1451 = vmatpush2.bf16.msra.mxu0 %v1346
    %1452 = vmatprep.subr.bf16.mxu0 0
    %1453 = vmatpush2.bf16.msra.mxu0 %v1345
    %1454 = vmatprep.subr.bf16.mxu0 0
    %1455 = vmatpush2.bf16.msra.mxu0 %v1344
    %1456 = vmatprep.mubr.bf16.mxu0 %v1120
    %1457 = vmatmul.mubr.bf16.gmra.mxu0 %v1119
    %v1458 = vpop.f32.mrf.mxu0
    %v1459 = vadd.f32 %v1419, %v1458
    %v1460 = vpop.f32.mrf.mxu0
    %v1461 = vpop.f32.mrf.mxu0
    %v1462 = vpop.f32.mrf.mxu0
    %1463 = vdwg.mxu0
    %vm1464 = vcmask 261120
    %1465 = vst.msk [vmem:[#allocation5] sm:$0xff] %vm1464, %v1459
    // Predicated region
    $region30: #{tpu_custom_call.1} parent=1 // pred_check
      _
    $region31: #{tpu_custom_call.1} parent=1 // pred_check_branch
      %1467 = sbr.rel (0) target = $region33
    $region32: #{tpu_custom_call.1} parent=1 // pred_region
      %s1469 = ssub.s32 128, 128
      %1470 = vsyncadd [#allocation4], %s1469
      %s1472 = sshll.u32 [#allocation5], 4
      %s1473 = int_to_ptr.vmem [resolvable:$true] %s1472
      %1475 = dma.vmem_to_hbm [thread:$0]  %s1473, 128, %s6, [#allocation4]
    $region33: #{tpu_custom_call.1} parent=1 // pred_fallthru
      _
    // Predicated region
    $region34: #{tpu_custom_call.1} parent=1 // pred_check
      _
    $region35: #{tpu_custom_call.1} parent=1 // pred_check_branch
      %1477 = sbr.rel (0) target = $region37
    $region36: #{tpu_custom_call.1} parent=1 // pred_region
      %1478 = dma.done [#allocation4], 128
    $region37: #{tpu_custom_call.1} parent=1 // pred_fallthru
      _
    %1479 = vsyncpa [#allocation3], 1
    %1480 = vsyncpa [#allocation4], 1

</llo_original>
